<compile_context>
chip_gen: v7x
topology: tpu7x:2x2x1
jax: 0.10.0
libtpu: 0.0.40
codegen_flags: <defaults>
</compile_context>

<pallas_src>
import functools

import jax
import jax.numpy as jnp
from jax.experimental import pallas as pl
from jax.experimental.pallas import tpu as pltpu


def _qnet_kernel(obs_ref, act_ref, w1o_ref, w1a_ref, b1_ref, w2_ref, b2_ref,
                 w3_ref, b3_ref, o_ref):
    """One batch tile of q = L3(relu(L2(relu(L1([obs, act])))))."""
    # Layer 1: torch's cat([obs, act], -1) @ W1 is folded into two dots
    # against the pre-split W1_obs / W1_act (no HBM- or VMEM-side concat).
    h = jnp.dot(obs_ref[...], w1o_ref[...], preferred_element_type=jnp.float32)
    h = h + jnp.dot(act_ref[...], w1a_ref[...],
                    preferred_element_type=jnp.float32)
    h = jnp.maximum(h + b1_ref[...], 0.0)
    # Layer 2.
    h = jnp.dot(h.astype(w2_ref.dtype), w2_ref[...],
                preferred_element_type=jnp.float32)
    h = jnp.maximum(h + b2_ref[...], 0.0)
    # Output layer: (bt, H2) @ (H2, 1).  No h.T and no M=1 matmul: the tiny
    # (H2, 1) stationary operand is loaded once and the MXU streams bt rows.
    q = jnp.dot(h.astype(w3_ref.dtype), w3_ref[...],
                preferred_element_type=jnp.float32)
    o_ref[...] = (q + b3_ref[0]).astype(o_ref.dtype)  # scalar bias from SMEM


def _round_up(x, m):
    return ((x + m - 1) // m) * m


def _pick_batch_tile(batch, gran):
    """Pick a batch tile such that:
       * it is a multiple of `gran` (8 rows f32 / 16 rows bf16) or equals the
         full batch (legal full-dim block), so no wrapper-side padding is ever
         needed;
       * large batches get large tiles (512 / 1024 / 2048 rows) to amortize
         the ~0.35us per-grid-step pipeline overhead;
       * the grid-step count is even (>= 2) for batches worth splitting, so
         the "parallel" axis balances across both v7x TensorCores.
    """
    if batch < 256:
        return batch                               # single full-dim tile
    if batch >= 8192:
        cap = 2048
    elif batch >= 2048:
        cap = 1024
    else:
        cap = 512
    num_tiles = max(2, -(-batch // cap))
    num_tiles += num_tiles % 2                     # even -> dual-TC balance
    bt = _round_up(-(-batch // num_tiles), gran)
    return min(bt, batch)


def prepare_params(params, obs_dim, compute_dtype=jnp.float32):
    """One-time conversion of raw (w1, b1, w2, b2, w3, b3) into kernel-ready
    layout/dtype.  Call this when the parameters change (once per optimizer
    step), NOT per forward call, so the per-call jit has no weight
    slice/cast/copy HLOs around the kernel.  Use compute_dtype=jnp.bfloat16 on
    v6e/v7x to halve streamed HBM bytes (accumulation stays f32)."""
    w1, b1, w2, b2, w3, b3 = params
    cd = jnp.dtype(compute_dtype)
    return {
        "w1_obs": jnp.asarray(w1[:obs_dim], cd),                # (obs_dim, H1)
        "w1_act": jnp.asarray(w1[obs_dim:], cd),                # (act_dim, H1)
        "b1": jnp.asarray(b1, jnp.float32).reshape(1, -1),      # (1, H1)
        "w2": jnp.asarray(w2, cd),                              # (H1, H2)
        "b2": jnp.asarray(b2, jnp.float32).reshape(1, -1),      # (1, H2)
        "w3": jnp.asarray(w3, cd),                              # (H2, 1) untransposed
        "b3": jnp.asarray(b3, jnp.float32).reshape(-1),         # (1,) SMEM scalar
    }


@functools.partial(jax.jit, static_argnames=("batch_tile",))
def mlp_q_function(obs, act, prepared, batch_tile=None):
    """Pallas implementation of MLPQFunction.forward(obs, act) -> (B,).
    `prepared` is the output of prepare_params()."""
    w1_obs, w1_act = prepared["w1_obs"], prepared["w1_act"]
    w2, w3 = prepared["w2"], prepared["w3"]
    b1, b2, b3 = prepared["b1"], prepared["b2"], prepared["b3"]

    B, obs_dim = obs.shape
    act_dim = act.shape[1]
    H1, H2 = w2.shape
    compute_dtype = w2.dtype
    itemsize = jnp.dtype(compute_dtype).itemsize
    gran = 16 if itemsize < 4 else 8

    bt = batch_tile if batch_tile is not None else _pick_batch_tile(B, gran)
    num_tiles = -(-B // bt)

    # Cast the streaming inputs at the boundary only.  No pad, no concat:
    # a ragged last tile is handled by Pallas' masked edge block (rows are
    # independent through the MLP; OOB output rows are dropped on store).
    obs_c = obs.astype(compute_dtype)
    act_c = act.astype(compute_dtype)

    D = obs_dim + act_dim
    flops = 2 * B * (D * H1 + H1 * H2 + H2)
    bytes_accessed = (itemsize * (B * D + D * H1 + H1 * H2 + H2)
                      + 4 * (H1 + H2 + 1 + B))

    q = pl.pallas_call(
        _qnet_kernel,
        out_shape=jax.ShapeDtypeStruct((B, 1), jnp.float32),
        grid_spec=pltpu.PrefetchScalarGridSpec(
            num_scalar_prefetch=0,
            grid=(num_tiles,),
            in_specs=[
                pl.BlockSpec((bt, obs_dim), lambda i: (i, 0)),      # obs tile
                pl.BlockSpec((bt, act_dim), lambda i: (i, 0)),      # act tile
                pl.BlockSpec((obs_dim, H1), lambda i: (0, 0)),      # W1_obs
                pl.BlockSpec((act_dim, H1), lambda i: (0, 0)),      # W1_act
                pl.BlockSpec((1, H1), lambda i: (0, 0)),            # b1
                pl.BlockSpec((H1, H2), lambda i: (0, 0)),           # W2
                pl.BlockSpec((1, H2), lambda i: (0, 0)),            # b2
                pl.BlockSpec((H2, 1), lambda i: (0, 0)),            # W3
                pl.BlockSpec(memory_space=pltpu.MemorySpace.SMEM),  # b3 scalar
            ],
            out_specs=pl.BlockSpec((bt, 1), lambda i: (i, 0)),
        ),
        compiler_params=pltpu.CompilerParams(
            dimension_semantics=("parallel",),
            vmem_limit_bytes=32 * 1024 * 1024,
        ),
        cost_estimate=pl.CostEstimate(
            flops=flops, transcendentals=0, bytes_accessed=bytes_accessed),
    )(obs_c, act_c, w1_obs, w1_act, b1, w2, b2, w3, b3)

    # torch.squeeze(q, -1)
    return jnp.squeeze(q, -1)


def init_params(key, obs_dim, act_dim, hidden_sizes):
    """Deterministic init matching nn.Linear default (uniform +-1/sqrt(fan_in))."""
    sizes = [obs_dim + act_dim] + list(hidden_sizes) + [1]
    params = []
    for j in range(len(sizes) - 1):
        fan_in, fan_out = sizes[j], sizes[j + 1]
        key, kw, kb = jax.random.split(key, 3)
        bound = 1.0 / jnp.sqrt(fan_in)
        w = jax.random.uniform(kw, (fan_in, fan_out), jnp.float32, -bound, bound)
        b = jax.random.uniform(kb, (1, fan_out), jnp.float32, -bound, bound)
        params += [w, b]
    return tuple(params)


def _reference(obs, act, params):
    """Pure-JAX reference for the correctness check."""
    w1, b1, w2, b2, w3, b3 = params
    x = jnp.concatenate([obs, act], axis=-1)
    h = jnp.maximum(x @ w1 + b1, 0.0)
    h = jnp.maximum(h @ w2 + b2, 0.0)
    q = h @ w3 + b3
    return q[:, 0]


if __name__ == "__main__":
    # Small shapes: batch=8, obs_dim=16, act_dim=8, hidden_sizes=(32, 32), ReLU.
    B, OBS_DIM, ACT_DIM = 8, 16, 8
    HIDDEN = (32, 32)

    key = jax.random.PRNGKey(0)
    k_obs, k_act, k_par = jax.random.split(key, 3)
    obs = jax.random.normal(k_obs, (B, OBS_DIM), jnp.float32)
    act = jax.random.normal(k_act, (B, ACT_DIM), jnp.float32)
    params = init_params(k_par, OBS_DIM, ACT_DIM, HIDDEN)

    # f32 path (strict check against the reference).
    prep_f32 = prepare_params(params, OBS_DIM, jnp.float32)
    q = jax.block_until_ready(mlp_q_function(obs, act, prep_f32))
    q_ref = _reference(obs, act, params)
    assert q.shape == (B,), q.shape
    assert jnp.allclose(q, q_ref, atol=1e-4, rtol=1e-4), (q, q_ref)

    # Multi-tile path with a ragged last tile (B not a tile multiple) —
    # exercises the no-pad edge-block handling and the even grid-step split.
    B2 = 300
    k_obs2, k_act2 = jax.random.split(jax.random.PRNGKey(1))
    obs2 = jax.random.normal(k_obs2, (B2, OBS_DIM), jnp.float32)
    act2 = jax.random.normal(k_act2, (B2, ACT_DIM), jnp.float32)
    q2 = jax.block_until_ready(mlp_q_function(obs2, act2, prep_f32))
    q2_ref = _reference(obs2, act2, params)
    assert q2.shape == (B2,), q2.shape
    assert jnp.allclose(q2, q2_ref, atol=1e-4, rtol=1e-4)

    # bf16 streaming path (recommended on v6e/v7x): f32 accumulation inside,
    # looser tolerance vs the f32 reference due to input/weight quantization.
    prep_bf16 = prepare_params(params, OBS_DIM, jnp.bfloat16)
    q3 = jax.block_until_ready(mlp_q_function(obs2, act2, prep_bf16))
    assert q3.shape == (B2,), q3.shape
    assert jnp.allclose(q3, q2_ref, atol=1e-1, rtol=1e-1)

    print("KERNEL_OK")
</pallas_src>

<mosaic_0001>
module attributes {stable_mosaic.version = 11 : i64} {
  func.func @_qnet_kernel(%arg0: i32, %arg1: memref<8x16xf32, #tpu.memory_space<vmem>>, %arg2: memref<8x8xf32, #tpu.memory_space<vmem>>, %arg3: memref<16x32xf32, #tpu.memory_space<vmem>>, %arg4: memref<8x32xf32, #tpu.memory_space<vmem>>, %arg5: memref<1x32xf32, #tpu.memory_space<vmem>>, %arg6: memref<32x32xf32, #tpu.memory_space<vmem>>, %arg7: memref<1x32xf32, #tpu.memory_space<vmem>>, %arg8: memref<32x1xf32, #tpu.memory_space<vmem>>, %arg9: memref<1xf32, #tpu.memory_space<smem>>, %arg10: memref<8x1xf32, #tpu.memory_space<vmem>>) attributes {dimension_semantics = [#tpu.dimension_semantics<parallel>], iteration_bounds = array<i64: 1>, scalar_prefetch = 0 : i64, scratch_operands = 0 : i64, tpu.core_type = #tpu.core_type<tc>, window_params = [{transform_indices = @transform_0, window_bounds = array<i64: 8, 16>}, {transform_indices = @transform_1, window_bounds = array<i64: 8, 8>}, {pipeline_mode = #tpu.pipeline_mode<synchronous>, transform_indices = @transform_2, window_bounds = array<i64: 16, 32>}, {pipeline_mode = #tpu.pipeline_mode<synchronous>, transform_indices = @transform_3, window_bounds = array<i64: 8, 32>}, {pipeline_mode = #tpu.pipeline_mode<synchronous>, transform_indices = @transform_4, window_bounds = array<i64: 1, 32>}, {pipeline_mode = #tpu.pipeline_mode<synchronous>, transform_indices = @transform_5, window_bounds = array<i64: 32, 32>}, {pipeline_mode = #tpu.pipeline_mode<synchronous>, transform_indices = @transform_6, window_bounds = array<i64: 1, 32>}, {pipeline_mode = #tpu.pipeline_mode<synchronous>, transform_indices = @transform_7, window_bounds = array<i64: 32, 1>}, {transform_indices = @transform_8, window_bounds = array<i64: 1>}, {transform_indices = @transform_9, window_bounds = array<i64: 8, 1>}]} {
    %c0 = arith.constant 0 : index
    %c0_0 = arith.constant 0 : index
    %0 = vector.load %arg1[%c0, %c0_0] : memref<8x16xf32, #tpu.memory_space<vmem>>, vector<8x16xf32>
    %c0_1 = arith.constant 0 : index
    %c0_2 = arith.constant 0 : index
    %1 = vector.load %arg3[%c0_1, %c0_2] : memref<16x32xf32, #tpu.memory_space<vmem>>, vector<16x32xf32>
    %cst = arith.constant dense<0.000000e+00> : vector<8x32xf32>
    %2 = tpu.matmul %0, %1, %cst {dimension_numbers = #tpu.dot_dimension_numbers<[1], [0], [0], [1], [0, 0, 1, 1], [], []>} : vector<8x16xf32>, vector<16x32xf32>, vector<8x32xf32> -> vector<8x32xf32>
    %c0_3 = arith.constant 0 : index
    %c0_4 = arith.constant 0 : index
    %3 = vector.load %arg2[%c0_3, %c0_4] : memref<8x8xf32, #tpu.memory_space<vmem>>, vector<8x8xf32>
    %c0_5 = arith.constant 0 : index
    %c0_6 = arith.constant 0 : index
    %4 = vector.load %arg4[%c0_5, %c0_6] : memref<8x32xf32, #tpu.memory_space<vmem>>, vector<8x32xf32>
    %cst_7 = arith.constant dense<0.000000e+00> : vector<8x32xf32>
    %5 = tpu.matmul %3, %4, %cst_7 {dimension_numbers = #tpu.dot_dimension_numbers<[1], [0], [0], [1], [0, 0, 1, 1], [], []>} : vector<8x8xf32>, vector<8x32xf32>, vector<8x32xf32> -> vector<8x32xf32>
    %6 = arith.addf %2, %5 : vector<8x32xf32>
    %c0_8 = arith.constant 0 : index
    %c0_9 = arith.constant 0 : index
    %7 = vector.load %arg5[%c0_8, %c0_9] : memref<1x32xf32, #tpu.memory_space<vmem>>, vector<1x32xf32>
    %8 = vector.broadcast %7 : vector<1x32xf32> to vector<8x32xf32>
    %9 = arith.addf %6, %8 : vector<8x32xf32>
    %cst_10 = arith.constant 0.000000e+00 : f32
    %10 = vector.broadcast %cst_10 : f32 to vector<8x32xf32>
    %11 = arith.maximumf %9, %10 : vector<8x32xf32>
    %c0_11 = arith.constant 0 : index
    %c0_12 = arith.constant 0 : index
    %12 = vector.load %arg6[%c0_11, %c0_12] : memref<32x32xf32, #tpu.memory_space<vmem>>, vector<32x32xf32>
    %cst_13 = arith.constant dense<0.000000e+00> : vector<8x32xf32>
    %13 = tpu.matmul %11, %12, %cst_13 {dimension_numbers = #tpu.dot_dimension_numbers<[1], [0], [0], [1], [0, 0, 1, 1], [], []>} : vector<8x32xf32>, vector<32x32xf32>, vector<8x32xf32> -> vector<8x32xf32>
    %c0_14 = arith.constant 0 : index
    %c0_15 = arith.constant 0 : index
    %14 = vector.load %arg7[%c0_14, %c0_15] : memref<1x32xf32, #tpu.memory_space<vmem>>, vector<1x32xf32>
    %15 = vector.broadcast %14 : vector<1x32xf32> to vector<8x32xf32>
    %16 = arith.addf %13, %15 : vector<8x32xf32>
    %cst_16 = arith.constant 0.000000e+00 : f32
    %17 = vector.broadcast %cst_16 : f32 to vector<8x32xf32>
    %18 = arith.maximumf %16, %17 : vector<8x32xf32>
    %c0_17 = arith.constant 0 : index
    %c0_18 = arith.constant 0 : index
    %19 = vector.load %arg8[%c0_17, %c0_18] : memref<32x1xf32, #tpu.memory_space<vmem>>, vector<32x1xf32>
    %cst_19 = arith.constant dense<0.000000e+00> : vector<8x1xf32>
    %20 = tpu.matmul %18, %19, %cst_19 {dimension_numbers = #tpu.dot_dimension_numbers<[1], [0], [0], [1], [0, 0, 1, 1], [], []>} : vector<8x32xf32>, vector<32x1xf32>, vector<8x1xf32> -> vector<8x1xf32>
    %c0_20 = arith.constant 0 : index
    %21 = memref.load %arg9[%c0_20] : memref<1xf32, #tpu.memory_space<smem>>
    %22 = vector.broadcast %21 : f32 to vector<8x1xf32>
    %23 = arith.addf %20, %22 : vector<8x1xf32>
    %c0_21 = arith.constant 0 : index
    %c0_22 = arith.constant 0 : index
    %24 = vector.load %arg10[%c0_21, %c0_22] : memref<8x1xf32, #tpu.memory_space<vmem>>, vector<8x1xf32>
    tpu.vector_store %arg10[%c0_21, %c0_22], %23 {strides = array<i32>} : memref<8x1xf32, #tpu.memory_space<vmem>>, vector<8x1xf32>,
    return
  }
  func.func @transform_0(%arg0: i32) -> (i32, i32) {
    %c0_i32 = arith.constant 0 : i32
    %c0_i32_0 = arith.constant 0 : i32
    return %arg0, %c0_i32 : i32, i32
  }
  func.func @transform_1(%arg0: i32) -> (i32, i32) {
    %c0_i32 = arith.constant 0 : i32
    %c0_i32_0 = arith.constant 0 : i32
    return %arg0, %c0_i32 : i32, i32
  }
  func.func @transform_2(%arg0: i32) -> (i32, i32) {
    %c0_i32 = arith.constant 0 : i32
    %c0_i32_0 = arith.constant 0 : i32
    %c0_i32_1 = arith.constant 0 : i32
    return %c0_i32, %c0_i32_0 : i32, i32
  }
  func.func @transform_3(%arg0: i32) -> (i32, i32) {
    %c0_i32 = arith.constant 0 : i32
    %c0_i32_0 = arith.constant 0 : i32
    %c0_i32_1 = arith.constant 0 : i32
    return %c0_i32, %c0_i32_0 : i32, i32
  }
  func.func @transform_4(%arg0: i32) -> (i32, i32) {
    %c0_i32 = arith.constant 0 : i32
    %c0_i32_0 = arith.constant 0 : i32
    %c0_i32_1 = arith.constant 0 : i32
    return %c0_i32, %c0_i32_0 : i32, i32
  }
  func.func @transform_5(%arg0: i32) -> (i32, i32) {
    %c0_i32 = arith.constant 0 : i32
    %c0_i32_0 = arith.constant 0 : i32
    %c0_i32_1 = arith.constant 0 : i32
    return %c0_i32, %c0_i32_0 : i32, i32
  }
  func.func @transform_6(%arg0: i32) -> (i32, i32) {
    %c0_i32 = arith.constant 0 : i32
    %c0_i32_0 = arith.constant 0 : i32
    %c0_i32_1 = arith.constant 0 : i32
    return %c0_i32, %c0_i32_0 : i32, i32
  }
  func.func @transform_7(%arg0: i32) -> (i32, i32) {
    %c0_i32 = arith.constant 0 : i32
    %c0_i32_0 = arith.constant 0 : i32
    %c0_i32_1 = arith.constant 0 : i32
    return %c0_i32, %c0_i32_0 : i32, i32
  }
  func.func @transform_8(%arg0: i32) -> i32 {
    %c0_i32 = arith.constant 0 : i32
    %c0_i32_0 = arith.constant 0 : i32
    return %c0_i32 : i32
  }
  func.func @transform_9(%arg0: i32) -> (i32, i32) {
    %c0_i32 = arith.constant 0 : i32
    %c0_i32_0 = arith.constant 0 : i32
    return %arg0, %c0_i32 : i32, i32
  }
}

</mosaic_0001>

<llo_original>
// kernel: mlp_q_function.1
$region0: #{mlp_q_function.1}
  #allocation0 [shape = 'u32[]', space=smem, size = 0x4, offset = 0x4, fixed_abs, tag = 'smem constant byte address 0x4 - core index']
  #allocation1 [shape = 'u32[144,128]{1,0:T(1,128)}', space=vmem, size = 0x12000, scoped, tag = 'internal scratch']
  #allocation2 [shape = 'f32[1]{0:T(128)S(6)}', space=smem, size = 0x200, scoped, tag = 'scoped memory for mlp_q_function.1']
  %s0 = inlined_call_operand.vmem [shape: f32[8,16], index: 0, kind: input, shape index: {}]
  %s1 = inlined_call_operand.hbm [shape: f32[8,8], index: 1, kind: input, shape index: {}]
  %s2 = inlined_call_operand.vmem [shape: f32[16,32], index: 2, kind: input, shape index: {}]
  %s3 = inlined_call_operand.hbm [shape: f32[8,32], index: 3, kind: input, shape index: {}]
  %s4 = inlined_call_operand.vmem [shape: f32[1,32], index: 4, kind: input, shape index: {}]
  %s5 = inlined_call_operand.vmem [shape: f32[32,32], index: 5, kind: input, shape index: {}]
  %s6 = inlined_call_operand.vmem [shape: f32[1,32], index: 6, kind: input, shape index: {}]
  %s7 = inlined_call_operand.vmem [shape: f32[32,1], index: 7, kind: input, shape index: {}]
  %s8 = inlined_call_operand.<no memory space> [shape: f32[1], index: 8, kind: input, shape index: {}]
  %s9 = inlined_call_operand.vmem [shape: f32[8,1], index: 9, kind: output, shape index: {}]
  %s10 = sld [smem:[#allocation0]]
  $region54: #{mlp_q_function.1} parent=0
    _
  %s12 = ssub.s32 1, %s10
  %s13 = scalar_select 0, %s12, %s10
  %14 = sst [smem:[#allocation2]] %s8
  $region1: #{mlp_q_function.1} parent=0
    #allocation3 [shape = 'u8[4096]{0}', space=vmem, size = 0x1000, scoped, tag = 'input window, operand 1, single buffered']
    #allocation4 [shape = 's32[1]{0}', space=sflag, size = 0x4, scoped, tag = 'scoped memory for mlp_q_function.1']
    #allocation5 [shape = 'u8[4096]{0}', space=vmem, size = 0x1000, scoped, tag = 'input window, operand 3, single buffered']
    #allocation6 [shape = 's32[1]{0}', space=sflag, size = 0x4, scoped, tag = 'scoped memory for mlp_q_function.1']
    %15 = vsyncpa [#allocation4], 0
    %16 = vsyncpa [#allocation6], 0
    // Predicated region
    $region2: #{mlp_q_function.1} parent=1 // pred_check
      _
    $region3: #{mlp_q_function.1} parent=1 // pred_check_branch
      %18 = sbr.rel (0) target = $region5
    $region4: #{mlp_q_function.1} parent=1 // pred_region
      _
    $region5: #{mlp_q_function.1} parent=1 // pred_fallthru
      _
    // Predicated region
    $region6: #{mlp_q_function.1} parent=1 // pred_check
      _
    $region7: #{mlp_q_function.1} parent=1 // pred_check_branch
      %20 = sbr.rel (0) target = $region9
    $region8: #{mlp_q_function.1} parent=1 // pred_region
      %s22 = ssub.s32 128, 128
      %23 = vsyncadd [#allocation4], %s22
      %s25 = sshll.u32 [#allocation3], 4
      %s26 = int_to_ptr.vmem [resolvable:$true] %s25
      %28 = dma.hbm_to_vmem [thread:$0]  %s1, 128, %s26, [#allocation4]
    $region9: #{mlp_q_function.1} parent=1 // pred_fallthru
      _
    // Predicated region
    $region10: #{mlp_q_function.1} parent=1 // pred_check
      _
    $region11: #{mlp_q_function.1} parent=1 // pred_check_branch
      %30 = sbr.rel (0) target = $region13
    $region12: #{mlp_q_function.1} parent=1 // pred_region
      _
    $region13: #{mlp_q_function.1} parent=1 // pred_fallthru
      _
    // Predicated region
    $region14: #{mlp_q_function.1} parent=1 // pred_check
      _
    $region15: #{mlp_q_function.1} parent=1 // pred_check_branch
      %32 = sbr.rel (0) target = $region17
    $region16: #{mlp_q_function.1} parent=1 // pred_region
      %s34 = ssub.s32 128, 128
      %35 = vsyncadd [#allocation6], %s34
      %s37 = sshll.u32 [#allocation5], 4
      %s38 = int_to_ptr.vmem [resolvable:$true] %s37
      %40 = dma.hbm_to_vmem [thread:$0]  %s3, 128, %s38, [#allocation6]
    $region17: #{mlp_q_function.1} parent=1 // pred_fallthru
      _
    // Predicated region
    $region18: #{mlp_q_function.1} parent=1 // pred_check
      _
    $region19: #{mlp_q_function.1} parent=1 // pred_check_branch
      %42 = sbr.rel (0) target = $region21
    $region20: #{mlp_q_function.1} parent=1 // pred_region
      _
    $region21: #{mlp_q_function.1} parent=1 // pred_fallthru
      _
    // Predicated region
    $region22: #{mlp_q_function.1} parent=1 // pred_check
      _
    $region23: #{mlp_q_function.1} parent=1 // pred_check_branch
      %44 = sbr.rel (0) target = $region25
    $region24: #{mlp_q_function.1} parent=1 // pred_region
      _
    $region25: #{mlp_q_function.1} parent=1 // pred_fallthru
      _
    // Predicated region
    $region26: #{mlp_q_function.1} parent=1 // pred_check
      _
    $region27: #{mlp_q_function.1} parent=1 // pred_check_branch
      %46 = sbr.rel (0) target = $region29
    $region28: #{mlp_q_function.1} parent=1 // pred_region
      _
    $region29: #{mlp_q_function.1} parent=1 // pred_fallthru
      _
    // Predicated region
    $region30: #{mlp_q_function.1} parent=1 // pred_check
      _
    $region31: #{mlp_q_function.1} parent=1 // pred_check_branch
      %48 = sbr.rel (0) target = $region33
    $region32: #{mlp_q_function.1} parent=1 // pred_region
      _
    $region33: #{mlp_q_function.1} parent=1 // pred_fallthru
      _
    // Predicated region
    $region34: #{mlp_q_function.1} parent=1 // pred_check
      _
    $region35: #{mlp_q_function.1} parent=1 // pred_check_branch
      %50 = sbr.rel (0) target = $region37
    $region36: #{mlp_q_function.1} parent=1 // pred_region
      _
    $region37: #{mlp_q_function.1} parent=1 // pred_fallthru
      _
    // Predicated region
    $region38: #{mlp_q_function.1} parent=1 // pred_check
      _
    $region39: #{mlp_q_function.1} parent=1 // pred_check_branch
      %52 = sbr.rel (0) target = $region41
    $region40: #{mlp_q_function.1} parent=1 // pred_region
      %53 = dma.done [#allocation4], 128
    $region41: #{mlp_q_function.1} parent=1 // pred_fallthru
      _
    // Predicated region
    $region42: #{mlp_q_function.1} parent=1 // pred_check
      _
    $region43: #{mlp_q_function.1} parent=1 // pred_check_branch
      %55 = sbr.rel (0) target = $region45
    $region44: #{mlp_q_function.1} parent=1 // pred_region
      %56 = dma.done [#allocation6], 128
    $region45: #{mlp_q_function.1} parent=1 // pred_fallthru
      _
    %v57 = vld [vmem:[%s0] sm:$0xff]
    %v58 = vld [vmem:[%s2] sm:$0xff]
    %v59 = vld [vmem:[%s2 + $0x8] sm:$0xff]
    %v60 = vld [vmem:[#allocation3] sm:$0xff]
    %v61 = vld [vmem:[#allocation5] sm:$0xff]
    %vm62 = vcmask 64512
    %v64 = vsel %vm62, %v60, 0
    %66 = vmatprep.subr.mxu0 0.0
    %67 = vmatpush1.msra.mxu0 %v61
    %68 = vmatprep.subr.mxu0 0.0
    %69 = vmatpush1.msra.mxu0 0.0
    %70 = vmatprep.subr.mxu0 0.0
    %71 = vmatpush1.msra.mxu0 0.0
    %72 = vmatprep.subr.mxu0 0.0
    %73 = vmatpush1.msra.mxu0 0.0
    %74 = vmatprep.subr.mxu0 0.0
    %75 = vmatpush1.msra.mxu0 0.0
    %76 = vmatprep.subr.mxu0 0.0
    %77 = vmatpush1.msra.mxu0 0.0
    %78 = vmatprep.subr.mxu0 0.0
    %79 = vmatpush1.msra.mxu0 0.0
    %80 = vmatprep.subr.mxu0 0.0
    %81 = vmatpush1.msra.mxu0 0.0
    %82 = vmatprep.subr.mxu0 0.0
    %83 = vmatpush1.msra.mxu0 0.0
    %84 = vmatprep.subr.mxu0 0.0
    %85 = vmatpush1.msra.mxu0 0.0
    %86 = vmatprep.subr.mxu0 0.0
    %87 = vmatpush1.msra.mxu0 0.0
    %88 = vmatprep.subr.mxu0 0.0
    %89 = vmatpush1.msra.mxu0 0.0
    %90 = vmatprep.subr.mxu0 0.0
    %91 = vmatpush1.msra.mxu0 0.0
    %92 = vmatprep.subr.mxu0 0.0
    %93 = vmatpush1.msra.mxu0 0.0
    %94 = vmatprep.subr.mxu0 0.0
    %95 = vmatpush1.msra.mxu0 0.0
    %96 = vmatprep.subr.mxu0 0.0
    %97 = vmatpush1.msra.mxu0 0.0
    %98 = vmatprep.subr.mxu0 0.0
    %99 = vmatpush1.msra.mxu0 0.0
    %100 = vmatprep.subr.mxu0 0.0
    %101 = vmatpush1.msra.mxu0 0.0
    %102 = vmatprep.subr.mxu0 0.0
    %103 = vmatpush1.msra.mxu0 0.0
    %104 = vmatprep.subr.mxu0 0.0
    %105 = vmatpush1.msra.mxu0 0.0
    %106 = vmatprep.subr.mxu0 0.0
    %107 = vmatpush1.msra.mxu0 0.0
    %108 = vmatprep.subr.mxu0 0.0
    %109 = vmatpush1.msra.mxu0 0.0
    %110 = vmatprep.subr.mxu0 0.0
    %111 = vmatpush1.msra.mxu0 0.0
    %112 = vmatprep.subr.mxu0 0.0
    %113 = vmatpush1.msra.mxu0 0.0
    %114 = vmatprep.subr.mxu0 0.0
    %115 = vmatpush1.msra.mxu0 0.0
    %116 = vmatprep.subr.mxu0 0.0
    %117 = vmatpush1.msra.mxu0 0.0
    %118 = vmatprep.subr.mxu0 0.0
    %119 = vmatpush1.msra.mxu0 0.0
    %120 = vmatprep.subr.mxu0 0.0
    %121 = vmatpush1.msra.mxu0 0.0
    %122 = vmatprep.subr.mxu0 0.0
    %123 = vmatpush1.msra.mxu0 0.0
    %124 = vmatprep.subr.mxu0 0.0
    %125 = vmatpush1.msra.mxu0 0.0
    %126 = vmatprep.subr.mxu0 0.0
    %127 = vmatpush1.msra.mxu0 0.0
    %128 = vmatprep.subr.mxu0 0.0
    %129 = vmatpush1.msra.mxu0 0.0
    %130 = vmatprep.mubr.f32.mxu0 0.0
    %131 = vmatmul.mubr.f32.gmra.mrb[0].mxu0 %v64
    %v132 = vpop.f32.mrb[0].mxu0
    %v133 = vadd.f32 0.0, %v132
    %v134 = vpop.f32.mrb[0].mxu0
    %135 = vdwg.mxu0
    %vm136 = vcmask 130048
    %v138 = vsel %vm136, %v57, 0
    %140 = vmatprep.subr.mxu0 0.0
    %141 = vmatpush1.msra.mxu0 %v58
    %142 = vmatprep.subr.mxu0 0.0
    %143 = vmatpush1.msra.mxu0 %v59
    %144 = vmatprep.subr.mxu0 0.0
    %145 = vmatpush1.msra.mxu0 0.0
    %146 = vmatprep.subr.mxu0 0.0
    %147 = vmatpush1.msra.mxu0 0.0
    %148 = vmatprep.subr.mxu0 0.0
    %149 = vmatpush1.msra.mxu0 0.0
    %150 = vmatprep.subr.mxu0 0.0
    %151 = vmatpush1.msra.mxu0 0.0
    %152 = vmatprep.subr.mxu0 0.0
    %153 = vmatpush1.msra.mxu0 0.0
    %154 = vmatprep.subr.mxu0 0.0
    %155 = vmatpush1.msra.mxu0 0.0
    %156 = vmatprep.subr.mxu0 0.0
    %157 = vmatpush1.msra.mxu0 0.0
    %158 = vmatprep.subr.mxu0 0.0
    %159 = vmatpush1.msra.mxu0 0.0
    %160 = vmatprep.subr.mxu0 0.0
    %161 = vmatpush1.msra.mxu0 0.0
    %162 = vmatprep.subr.mxu0 0.0
    %163 = vmatpush1.msra.mxu0 0.0
    %164 = vmatprep.subr.mxu0 0.0
    %165 = vmatpush1.msra.mxu0 0.0
    %166 = vmatprep.subr.mxu0 0.0
    %167 = vmatpush1.msra.mxu0 0.0
    %168 = vmatprep.subr.mxu0 0.0
    %169 = vmatpush1.msra.mxu0 0.0
    %170 = vmatprep.subr.mxu0 0.0
    %171 = vmatpush1.msra.mxu0 0.0
    %172 = vmatprep.subr.mxu0 0.0
    %173 = vmatpush1.msra.mxu0 0.0
    %174 = vmatprep.subr.mxu0 0.0
    %175 = vmatpush1.msra.mxu0 0.0
    %176 = vmatprep.subr.mxu0 0.0
    %177 = vmatpush1.msra.mxu0 0.0
    %178 = vmatprep.subr.mxu0 0.0
    %179 = vmatpush1.msra.mxu0 0.0
    %180 = vmatprep.subr.mxu0 0.0
    %181 = vmatpush1.msra.mxu0 0.0
    %182 = vmatprep.subr.mxu0 0.0
    %183 = vmatpush1.msra.mxu0 0.0
    %184 = vmatprep.subr.mxu0 0.0
    %185 = vmatpush1.msra.mxu0 0.0
    %186 = vmatprep.subr.mxu0 0.0
    %187 = vmatpush1.msra.mxu0 0.0
    %188 = vmatprep.subr.mxu0 0.0
    %189 = vmatpush1.msra.mxu0 0.0
    %190 = vmatprep.subr.mxu0 0.0
    %191 = vmatpush1.msra.mxu0 0.0
    %192 = vmatprep.subr.mxu0 0.0
    %193 = vmatpush1.msra.mxu0 0.0
    %194 = vmatprep.subr.mxu0 0.0
    %195 = vmatpush1.msra.mxu0 0.0
    %196 = vmatprep.subr.mxu0 0.0
    %197 = vmatpush1.msra.mxu0 0.0
    %198 = vmatprep.subr.mxu0 0.0
    %199 = vmatpush1.msra.mxu0 0.0
    %200 = vmatprep.subr.mxu0 0.0
    %201 = vmatpush1.msra.mxu0 0.0
    %202 = vmatprep.subr.mxu0 0.0
    %203 = vmatpush1.msra.mxu0 0.0
    %204 = vmatprep.mubr.f32.mxu0 0.0
    %205 = vmatmul.mubr.f32.gmra.mrb[0].mxu0 %v138
    %v206 = vpop.f32.mrb[0].mxu0
    %v207 = vadd.f32 %v133, %v206
    %v208 = vpop.f32.mrb[0].mxu0
    %209 = vdwg.mxu0
    %v210 = vld [vmem:[%s4] sm:$0x1]
    %v212 = vlaneseq
    %v213 = vshrl.u32 %v212, 7
    %v214 = vsub.s32 0, %v213
    %v215 = vrot.slane %v210, %v214
    %v217 = vadd.f32 %v207, %v215
    %v218 = vmax.f32 %v217, 0.0
    %v219 = vld [vmem:[%s5] sm:$0xff]
    %v220 = vld [vmem:[%s5 + $0x8] sm:$0xff]
    %v221 = vld [vmem:[%s5 + $0x10] sm:$0xff]
    %v222 = vld [vmem:[%s5 + $0x18] sm:$0xff]
    %v223 = vld [vmem:[%s6] sm:$0x1]
    %v225 = vlaneseq
    %v226 = vshrl.u32 %v225, 7
    %v227 = vsub.s32 0, %v226
    %v228 = vrot.slane %v223, %v227
    %vm230 = vcmask 261120
    %v232 = vsel %vm230, %v218, 0
    %234 = vmatprep.subr.mxu0 0.0
    %235 = vmatpush1.msra.mxu0 %v219
    %236 = vmatprep.subr.mxu0 0.0
    %237 = vmatpush1.msra.mxu0 %v220
    %238 = vmatprep.subr.mxu0 0.0
    %239 = vmatpush1.msra.mxu0 %v221
    %240 = vmatprep.subr.mxu0 0.0
    %241 = vmatpush1.msra.mxu0 %v222
    %242 = vmatprep.subr.mxu0 0.0
    %243 = vmatpush1.msra.mxu0 0.0
    %244 = vmatprep.subr.mxu0 0.0
    %245 = vmatpush1.msra.mxu0 0.0
    %246 = vmatprep.subr.mxu0 0.0
    %247 = vmatpush1.msra.mxu0 0.0
    %248 = vmatprep.subr.mxu0 0.0
    %249 = vmatpush1.msra.mxu0 0.0
    %250 = vmatprep.subr.mxu0 0.0
    %251 = vmatpush1.msra.mxu0 0.0
    %252 = vmatprep.subr.mxu0 0.0
    %253 = vmatpush1.msra.mxu0 0.0
    %254 = vmatprep.subr.mxu0 0.0
    %255 = vmatpush1.msra.mxu0 0.0
    %256 = vmatprep.subr.mxu0 0.0
    %257 = vmatpush1.msra.mxu0 0.0
    %258 = vmatprep.subr.mxu0 0.0
    %259 = vmatpush1.msra.mxu0 0.0
    %260 = vmatprep.subr.mxu0 0.0
    %261 = vmatpush1.msra.mxu0 0.0
    %262 = vmatprep.subr.mxu0 0.0
    %263 = vmatpush1.msra.mxu0 0.0
    %264 = vmatprep.subr.mxu0 0.0
    %265 = vmatpush1.msra.mxu0 0.0
    %266 = vmatprep.subr.mxu0 0.0
    %267 = vmatpush1.msra.mxu0 0.0
    %268 = vmatprep.subr.mxu0 0.0
    %269 = vmatpush1.msra.mxu0 0.0
    %270 = vmatprep.subr.mxu0 0.0
    %271 = vmatpush1.msra.mxu0 0.0
    %272 = vmatprep.subr.mxu0 0.0
    %273 = vmatpush1.msra.mxu0 0.0
    %274 = vmatprep.subr.mxu0 0.0
    %275 = vmatpush1.msra.mxu0 0.0
    %276 = vmatprep.subr.mxu0 0.0
    %277 = vmatpush1.msra.mxu0 0.0
    %278 = vmatprep.subr.mxu0 0.0
    %279 = vmatpush1.msra.mxu0 0.0
    %280 = vmatprep.subr.mxu0 0.0
    %281 = vmatpush1.msra.mxu0 0.0
    %282 = vmatprep.subr.mxu0 0.0
    %283 = vmatpush1.msra.mxu0 0.0
    %284 = vmatprep.subr.mxu0 0.0
    %285 = vmatpush1.msra.mxu0 0.0
    %286 = vmatprep.subr.mxu0 0.0
    %287 = vmatpush1.msra.mxu0 0.0
    %288 = vmatprep.subr.mxu0 0.0
    %289 = vmatpush1.msra.mxu0 0.0
    %290 = vmatprep.subr.mxu0 0.0
    %291 = vmatpush1.msra.mxu0 0.0
    %292 = vmatprep.subr.mxu0 0.0
    %293 = vmatpush1.msra.mxu0 0.0
    %294 = vmatprep.subr.mxu0 0.0
    %295 = vmatpush1.msra.mxu0 0.0
    %296 = vmatprep.subr.mxu0 0.0
    %297 = vmatpush1.msra.mxu0 0.0
    %298 = vmatprep.mubr.f32.mxu0 0.0
    %299 = vmatmul.mubr.f32.gmra.mrb[0].mxu0 %v232
    %v300 = vpop.f32.mrb[0].mxu0
    %v301 = vadd.f32 %v228, %v300
    %v302 = vpop.f32.mrb[0].mxu0
    %303 = vdwg.mxu0
    %v304 = vmax.f32 %v301, 0.0
    %v305 = vld [vmem:[%s7] sm:$0xff]
    %v306 = vld [vmem:[%s7 + $0x8] sm:$0xff]
    %v307 = vld [vmem:[%s7 + $0x10] sm:$0xff]
    %v308 = vld [vmem:[%s7 + $0x18] sm:$0xff]
    %s309 = sld [smem:[#allocation2]]
    %v310 = vstv %s309
    %v312 = vsel %vm230, %v304, 0
    %314 = vmatprep.subr.mxu0 0.0
    %315 = vmatpush1.msra.mxu0 %v305
    %316 = vmatprep.subr.mxu0 0.0
    %317 = vmatpush1.msra.mxu0 %v306
    %318 = vmatprep.subr.mxu0 0.0
    %319 = vmatpush1.msra.mxu0 %v307
    %320 = vmatprep.subr.mxu0 0.0
    %321 = vmatpush1.msra.mxu0 %v308
    %322 = vmatprep.subr.mxu0 0.0
    %323 = vmatpush1.msra.mxu0 0.0
    %324 = vmatprep.subr.mxu0 0.0
    %325 = vmatpush1.msra.mxu0 0.0
    %326 = vmatprep.subr.mxu0 0.0
    %327 = vmatpush1.msra.mxu0 0.0
    %328 = vmatprep.subr.mxu0 0.0
    %329 = vmatpush1.msra.mxu0 0.0
    %330 = vmatprep.subr.mxu0 0.0
    %331 = vmatpush1.msra.mxu0 0.0
    %332 = vmatprep.subr.mxu0 0.0
    %333 = vmatpush1.msra.mxu0 0.0
    %334 = vmatprep.subr.mxu0 0.0
    %335 = vmatpush1.msra.mxu0 0.0
    %336 = vmatprep.subr.mxu0 0.0
    %337 = vmatpush1.msra.mxu0 0.0
    %338 = vmatprep.subr.mxu0 0.0
    %339 = vmatpush1.msra.mxu0 0.0
    %340 = vmatprep.subr.mxu0 0.0
    %341 = vmatpush1.msra.mxu0 0.0
    %342 = vmatprep.subr.mxu0 0.0
    %343 = vmatpush1.msra.mxu0 0.0
    %344 = vmatprep.subr.mxu0 0.0
    %345 = vmatpush1.msra.mxu0 0.0
    %346 = vmatprep.subr.mxu0 0.0
    %347 = vmatpush1.msra.mxu0 0.0
    %348 = vmatprep.subr.mxu0 0.0
    %349 = vmatpush1.msra.mxu0 0.0
    %350 = vmatprep.subr.mxu0 0.0
    %351 = vmatpush1.msra.mxu0 0.0
    %352 = vmatprep.subr.mxu0 0.0
    %353 = vmatpush1.msra.mxu0 0.0
    %354 = vmatprep.subr.mxu0 0.0
    %355 = vmatpush1.msra.mxu0 0.0
    %356 = vmatprep.subr.mxu0 0.0
    %357 = vmatpush1.msra.mxu0 0.0
    %358 = vmatprep.subr.mxu0 0.0
    %359 = vmatpush1.msra.mxu0 0.0
    %360 = vmatprep.subr.mxu0 0.0
    %361 = vmatpush1.msra.mxu0 0.0
    %362 = vmatprep.subr.mxu0 0.0
    %363 = vmatpush1.msra.mxu0 0.0
    %364 = vmatprep.subr.mxu0 0.0
    %365 = vmatpush1.msra.mxu0 0.0
    %366 = vmatprep.subr.mxu0 0.0
    %367 = vmatpush1.msra.mxu0 0.0
    %368 = vmatprep.subr.mxu0 0.0
    %369 = vmatpush1.msra.mxu0 0.0
    %370 = vmatprep.subr.mxu0 0.0
    %371 = vmatpush1.msra.mxu0 0.0
    %372 = vmatprep.subr.mxu0 0.0
    %373 = vmatpush1.msra.mxu0 0.0
    %374 = vmatprep.subr.mxu0 0.0
    %375 = vmatpush1.msra.mxu0 0.0
    %376 = vmatprep.subr.mxu0 0.0
    %377 = vmatpush1.msra.mxu0 0.0
    %378 = vmatprep.mubr.f32.mxu0 0.0
    %379 = vmatmul.mubr.f32.gmra.mrb[0].mxu0 %v312
    %v380 = vpop.f32.mrb[0].mxu0
    %v381 = vadd.f32 %v310, %v380
    %v382 = vpop.f32.mrb[0].mxu0
    %383 = vdwg.mxu0
    %vm384 = vcmask 7168
    %385 = vst.msk [vmem:[%s9] sm:$0xff] %vm384, %v381
    // Predicated region
    $region46: #{mlp_q_function.1} parent=1 // pred_check
      _
    $region47: #{mlp_q_function.1} parent=1 // pred_check_branch
      %387 = sbr.rel (0) target = $region49
    $region48: #{mlp_q_function.1} parent=1 // pred_region
      _
    $region49: #{mlp_q_function.1} parent=1 // pred_fallthru
      _
    // Predicated region
    $region50: #{mlp_q_function.1} parent=1 // pred_check
      _
    $region51: #{mlp_q_function.1} parent=1 // pred_check_branch
      %389 = sbr.rel (0) target = $region53
    $region52: #{mlp_q_function.1} parent=1 // pred_region
      _
    $region53: #{mlp_q_function.1} parent=1 // pred_fallthru
      _
    %390 = vsyncpa [#allocation4], 1
    %391 = vsyncpa [#allocation6], 1

</llo_original>
